<compile_context>
chip_gen: v7x
topology: tpu7x:2x2x1
jax: 0.10.0
libtpu: 0.0.40
codegen_flags: <defaults>
</compile_context>

<pallas_src>
import jax
import jax.numpy as jnp
from jax import lax
from jax.experimental import pallas as pl
from jax.experimental.pallas import tpu as pltpu


def make_mlp_kernel(p_true: int):
    """Build the fused MLP kernel; p_true is the unpadded projector size (LN stats)."""
    inv_p = 1.0 / float(p_true)

    def mlp_kernel(x_ref, w1_ref, bgb_ref, w2_ref, b2_ref, o_ref):
        # x_ref:   (TB, Hp)  batch tile (compute dtype, bf16 or f32)
        # w1_ref:  (Hp, Pp)  first linear weight (compute dtype, zero-padded)
        # bgb_ref: (3,  Pp)  f32 slab: row0 = b1, row1 = gamma, row2 = beta (zero-padded)
        # w2_ref:  (Pp, Hp)  second linear weight (compute dtype, zero-padded)
        # b2_ref:  (1,  Hp)  second linear bias (f32, zero-padded)
        # o_ref:   (TB, Hp)
        x = x_ref[...]

        # Linear 1: MXU matmul in the native dtype, f32 accumulation.
        h = jnp.dot(x, w1_ref[...], preferred_element_type=jnp.float32)
        bgb = bgb_ref[...]
        h = h + bgb[0:1, :]  # + b1 (f32)

        # BertLayerNorm (eps=1e-12) over the *true* projector width.
        # Padded columns of h are exactly zero (zero-padded w1 cols / b1), so sums
        # divided by p_true give the unpadded mean / E[h^2]. One-pass variance,
        # clamped at 0 to avoid NaN from f32 cancellation (and on padded rows).
        mu = jnp.sum(h, axis=-1, keepdims=True) * inv_p
        ms = jnp.sum(h * h, axis=-1, keepdims=True) * inv_p
        var = jnp.maximum(ms - mu * mu, 0.0)
        hn = (h - mu) * lax.rsqrt(var + 1e-12)
        # gamma/beta are zero in the padded columns -> padded lanes collapse to 0.
        hn = hn * bgb[1:2, :] + bgb[2:3, :]

        # ReLU
        hn = jnp.maximum(hn, 0.0)

        # Linear 2: cast the f32 intermediate to the weight dtype so the MXU runs
        # at its fast rate on the bf16 path; accumulate in f32.
        out = jnp.dot(hn.astype(w2_ref.dtype), w2_ref[...],
                      preferred_element_type=jnp.float32)
        out = out + b2_ref[...]

        o_ref[...] = out.astype(o_ref.dtype)

    return mlp_kernel


def _round_up(n: int, m: int) -> int:
    return ((n + m - 1) // m) * m


def _cdiv(a: int, b: int) -> int:
    return (a + b - 1) // b


def _vmem_budget_bytes() -> int:
    """~87% of the device's VMEM capacity (per-TC on v7x), with a safe fallback."""
    try:
        cap = int(pltpu.get_tpu_info().vmem_capacity_bytes)
    except Exception:
        cap = 64 * 1024 * 1024  # conservative: v7x per-TC VMEM
    return int(cap * 0.875)


def _invariant_spec(shape):
    """BlockSpec for a grid-invariant operand, single-buffered when supported."""
    idx = lambda i, _n=len(shape): (0,) * _n
    if hasattr(pl, "Buffered"):
        try:
            return pl.BlockSpec(shape, idx, pipeline_mode=pl.Buffered(1))
        except TypeError:
            pass
    return pl.BlockSpec(shape, idx)


def mlp_forward(x, params, *, tb=None, compute_dtype=None):
    """x: (B, hidden_size). params: dict of f32 weights/biases.

    compute_dtype: dtype fed to the MXU (e.g. jnp.bfloat16 for the fast path,
    recommended on v5e). Defaults to x.dtype to preserve the module's numerics.
    """
    B, H = x.shape
    P = params["w1"].shape[1]
    out_dtype = x.dtype
    cdt = jnp.dtype(compute_dtype if compute_dtype is not None else x.dtype)
    isz = cdt.itemsize
    osz = jnp.dtype(out_dtype).itemsize

    # Lane-dense feature dims: multiples of 128 for MXU / vreg fill.
    # (Sweep 256-granular padding on v6e/v7x if Hp/Pp land on odd multiples of 128
    #  and the bundle dump shows vmatmul cadence gaps.)
    Hp = _round_up(H, 128)
    Pp = _round_up(P, 128)

    # Packed-sublane granularity of the compute dtype (bf16 packs 16 rows / vreg).
    gran = {1: 32, 2: 16, 4: 8}.get(isz, 8)

    # Batch tile selection: cap per dtype, but when B is large force >= 4 even
    # grid steps so both v7x TensorCores get work and BlockSpec double-buffering
    # actually overlaps the x/out DMAs with MXU work.
    if tb is None:
        cap = 512 if isz <= 2 else 256
        n_tiles = _cdiv(B, cap)
        if n_tiles > 1:
            n_tiles = max(4, n_tiles)
            n_tiles += n_tiles % 2
        tb = _cdiv(B, n_tiles)
    tb = min(int(tb), _round_up(B, gran))
    tb = max(gran, _round_up(tb, gran))

    # VMEM working-set estimate (weights single-buffered, x/out double-buffered).
    def working_set(tb_):
        return int(
            2 * Hp * Pp * isz            # w1 + w2 resident (single-buffered)
            + (3 * Pp + Hp) * 4          # bias/gamma/beta slab + b2 (f32)
            + 2 * tb_ * Hp * isz         # x tile, double-buffered
            + 2 * tb_ * Hp * osz         # out tile, double-buffered
            + 3 * tb_ * Pp * 4           # f32 h / hn intermediates (headroom)
            + 2 * 1024 * 1024            # compiler internal scratch headroom
        )

    budget = _vmem_budget_bytes()
    # Shrink tb (not the limit) if the working set does not fit the device budget.
    while working_set(tb) > budget and tb > gran:
        tb = max(gran, _round_up(tb // 2, gran))

    Bp = _round_up(B, tb)
    grid = (Bp // tb,)

    need = working_set(tb)
    if need > budget:
        # Weights alone exceed the budget: this needs the P-chunked reduction path.
        # TODO(synk): stream w1/w2 in P-chunks (second grid axis) for this regime.
        vmem_limit = budget
    else:
        vmem_limit = min(budget, max(int(need * 1.25), 32 * 1024 * 1024))

    # Pad + cast ONCE in the wrapper (never per grid step inside the kernel).
    def pad2(a, rows, cols):
        return jnp.pad(a, ((0, rows - a.shape[0]), (0, cols - a.shape[1])))

    x_p = pad2(x, Bp, Hp).astype(cdt)
    w1_p = pad2(params["w1"], Hp, Pp).astype(cdt)
    w2_p = pad2(params["w2"], Pp, Hp).astype(cdt)
    bgb_p = jnp.concatenate(
        [pad2(params["b1"], 1, Pp).astype(jnp.float32),
         pad2(params["gamma"], 1, Pp).astype(jnp.float32),
         pad2(params["beta"], 1, Pp).astype(jnp.float32)], axis=0)   # (3, Pp)
    b2_p = pad2(params["b2"], 1, Hp).astype(jnp.float32)

    out_p = pl.pallas_call(
        make_mlp_kernel(P),
        out_shape=jax.ShapeDtypeStruct((Bp, Hp), out_dtype),
        grid_spec=pltpu.PrefetchScalarGridSpec(
            num_scalar_prefetch=0,
            grid=grid,
            in_specs=[
                pl.BlockSpec((tb, Hp), lambda i: (i, 0)),   # x tile (pipelined)
                _invariant_spec((Hp, Pp)),                  # w1 (resident, 1-buffered)
                _invariant_spec((3, Pp)),                   # b1/gamma/beta slab
                _invariant_spec((Pp, Hp)),                  # w2 (resident, 1-buffered)
                _invariant_spec((1, Hp)),                   # b2
            ],
            out_specs=pl.BlockSpec((tb, Hp), lambda i: (i, 0)),
        ),
        compiler_params=pltpu.CompilerParams(
            dimension_semantics=("parallel",),
            vmem_limit_bytes=int(vmem_limit),
        ),
    )(x_p, w1_p, bgb_p, w2_p, b2_p)

    # Slice away batch / lane padding.
    return out_p[:B, :H]


def init_params(key, hidden_size, projector_size):
    """Deterministic init mimicking nn.Linear (uniform +-1/sqrt(fan_in)) and
    BertLayerNorm (gamma=1, beta=0)."""
    k1, k2, k3, k4 = jax.random.split(key, 4)
    lim1 = 1.0 / jnp.sqrt(hidden_size)
    lim2 = 1.0 / jnp.sqrt(projector_size)
    return {
        "w1": jax.random.uniform(k1, (hidden_size, projector_size),
                                 jnp.float32, -lim1, lim1),
        "b1": jax.random.uniform(k2, (1, projector_size),
                                 jnp.float32, -lim1, lim1),
        "gamma": jnp.ones((1, projector_size), jnp.float32),
        "beta": jnp.zeros((1, projector_size), jnp.float32),
        "w2": jax.random.uniform(k3, (projector_size, hidden_size),
                                 jnp.float32, -lim2, lim2),
        "b2": jax.random.uniform(k4, (1, hidden_size),
                                 jnp.float32, -lim2, lim2),
    }


def mlp_reference(x, params):
    h = x @ params["w1"] + params["b1"]
    mu = jnp.mean(h, axis=-1, keepdims=True)
    var = jnp.mean((h - mu) ** 2, axis=-1, keepdims=True)
    hn = (h - mu) / jnp.sqrt(var + 1e-12)
    hn = hn * params["gamma"] + params["beta"]
    hn = jnp.maximum(hn, 0.0)
    return hn @ params["w2"] + params["b2"]


if __name__ == "__main__":
    hidden_size = 32
    projector_size = 64
    batch = 8

    key = jax.random.PRNGKey(0)
    kx, kp = jax.random.split(key)
    x = jax.random.normal(kx, (batch, hidden_size), jnp.float32)
    params = init_params(kp, hidden_size, projector_size)

    ref = mlp_reference(x, params)

    # f32 compute path: tight check against the pure-JAX reference.
    out = jax.block_until_ready(mlp_forward(x, params))
    assert out.shape == (batch, hidden_size)
    assert jnp.allclose(out, ref, atol=1e-5, rtol=1e-5)

    # bf16 compute path (fast MXU rate, f32 accumulation): looser tolerance.
    out_bf16 = jax.block_until_ready(
        mlp_forward(x, params, compute_dtype=jnp.bfloat16))
    assert out_bf16.shape == (batch, hidden_size)
    assert jnp.allclose(out_bf16, ref, atol=5e-2, rtol=5e-2)

    print("KERNEL_OK")
</pallas_src>

<mosaic_0001>
module attributes {stable_mosaic.version = 11 : i64} {
  func.func @mlp_kernel(%arg0: i32, %arg1: memref<8x128xf32, #tpu.memory_space<vmem>>, %arg2: memref<128x128xf32, #tpu.memory_space<vmem>>, %arg3: memref<3x128xf32, #tpu.memory_space<vmem>>, %arg4: memref<128x128xf32, #tpu.memory_space<vmem>>, %arg5: memref<1x128xf32, #tpu.memory_space<vmem>>, %arg6: memref<8x128xf32, #tpu.memory_space<vmem>>) attributes {dimension_semantics = [#tpu.dimension_semantics<parallel>], iteration_bounds = array<i64: 1>, scalar_prefetch = 0 : i64, scratch_operands = 0 : i64, tpu.core_type = #tpu.core_type<tc>, window_params = [{transform_indices = @transform_0, window_bounds = array<i64: 8, 128>}, {pipeline_mode = #tpu.pipeline_mode<synchronous>, transform_indices = @transform_1, window_bounds = array<i64: 128, 128>}, {pipeline_mode = #tpu.pipeline_mode<synchronous>, transform_indices = @transform_2, window_bounds = array<i64: 3, 128>}, {pipeline_mode = #tpu.pipeline_mode<synchronous>, transform_indices = @transform_3, window_bounds = array<i64: 128, 128>}, {pipeline_mode = #tpu.pipeline_mode<synchronous>, transform_indices = @transform_4, window_bounds = array<i64: 1, 128>}, {transform_indices = @transform_5, window_bounds = array<i64: 8, 128>}]} {
    %c0 = arith.constant 0 : index
    %c0_0 = arith.constant 0 : index
    %0 = vector.load %arg1[%c0, %c0_0] : memref<8x128xf32, #tpu.memory_space<vmem>>, vector<8x128xf32>
    %c0_1 = arith.constant 0 : index
    %c0_2 = arith.constant 0 : index
    %1 = vector.load %arg2[%c0_1, %c0_2] : memref<128x128xf32, #tpu.memory_space<vmem>>, vector<128x128xf32>
    %cst = arith.constant dense<0.000000e+00> : vector<8x128xf32>
    %2 = tpu.matmul %0, %1, %cst {dimension_numbers = #tpu.dot_dimension_numbers<[1], [0], [0], [1], [0, 0, 1, 1], [], []>} : vector<8x128xf32>, vector<128x128xf32>, vector<8x128xf32> -> vector<8x128xf32>
    %c0_3 = arith.constant 0 : index
    %c0_4 = arith.constant 0 : index
    %3 = vector.load %arg3[%c0_3, %c0_4] : memref<3x128xf32, #tpu.memory_space<vmem>>, vector<3x128xf32>
    %4 = vector.extract_strided_slice %3 {offsets = [0, 0], sizes = [1, 128], strides = [1, 1]} : vector<3x128xf32> to vector<1x128xf32>
    %5 = vector.broadcast %4 : vector<1x128xf32> to vector<8x128xf32>
    %6 = arith.addf %2, %5 : vector<8x128xf32>
    %cst_5 = arith.constant dense<0.000000e+00> : vector<8xf32>
    %7 = vector.multi_reduction <add>, %6, %cst_5 [1] : vector<8x128xf32> to vector<8xf32>
    %8 = vector.shape_cast %7 : vector<8xf32> to vector<8x1xf32>
    %cst_6 = arith.constant 1.562500e-02 : f32
    %9 = vector.broadcast %cst_6 : f32 to vector<8x1xf32>
    %10 = arith.mulf %8, %9 : vector<8x1xf32>
    %11 = arith.mulf %6, %6 : vector<8x128xf32>
    %cst_7 = arith.constant dense<0.000000e+00> : vector<8xf32>
    %12 = vector.multi_reduction <add>, %11, %cst_7 [1] : vector<8x128xf32> to vector<8xf32>
    %13 = vector.shape_cast %12 : vector<8xf32> to vector<8x1xf32>
    %cst_8 = arith.constant 1.562500e-02 : f32
    %14 = vector.broadcast %cst_8 : f32 to vector<8x1xf32>
    %15 = arith.mulf %13, %14 : vector<8x1xf32>
    %16 = arith.mulf %10, %10 : vector<8x1xf32>
    %17 = arith.subf %15, %16 : vector<8x1xf32>
    %cst_9 = arith.constant 0.000000e+00 : f32
    %18 = vector.broadcast %cst_9 : f32 to vector<8x1xf32>
    %19 = arith.maximumf %17, %18 : vector<8x1xf32>
    %20 = vector.broadcast %10 : vector<8x1xf32> to vector<8x128xf32>
    %21 = arith.subf %6, %20 : vector<8x128xf32>
    %cst_10 = arith.constant 9.99999996E-13 : f32
    %22 = vector.broadcast %cst_10 : f32 to vector<8x1xf32>
    %23 = arith.addf %19, %22 : vector<8x1xf32>
    %24 = math.rsqrt %23 : vector<8x1xf32>
    %25 = vector.broadcast %24 : vector<8x1xf32> to vector<8x128xf32>
    %26 = arith.mulf %21, %25 : vector<8x128xf32>
    %27 = vector.extract_strided_slice %3 {offsets = [1, 0], sizes = [1, 128], strides = [1, 1]} : vector<3x128xf32> to vector<1x128xf32>
    %28 = vector.broadcast %27 : vector<1x128xf32> to vector<8x128xf32>
    %29 = arith.mulf %26, %28 : vector<8x128xf32>
    %30 = vector.extract_strided_slice %3 {offsets = [2, 0], sizes = [1, 128], strides = [1, 1]} : vector<3x128xf32> to vector<1x128xf32>
    %31 = vector.broadcast %30 : vector<1x128xf32> to vector<8x128xf32>
    %32 = arith.addf %29, %31 : vector<8x128xf32>
    %cst_11 = arith.constant 0.000000e+00 : f32
    %33 = vector.broadcast %cst_11 : f32 to vector<8x128xf32>
    %34 = arith.maximumf %32, %33 : vector<8x128xf32>
    %c0_12 = arith.constant 0 : index
    %c0_13 = arith.constant 0 : index
    %35 = vector.load %arg4[%c0_12, %c0_13] : memref<128x128xf32, #tpu.memory_space<vmem>>, vector<128x128xf32>
    %cst_14 = arith.constant dense<0.000000e+00> : vector<8x128xf32>
    %36 = tpu.matmul %34, %35, %cst_14 {dimension_numbers = #tpu.dot_dimension_numbers<[1], [0], [0], [1], [0, 0, 1, 1], [], []>} : vector<8x128xf32>, vector<128x128xf32>, vector<8x128xf32> -> vector<8x128xf32>
    %c0_15 = arith.constant 0 : index
    %c0_16 = arith.constant 0 : index
    %37 = vector.load %arg5[%c0_15, %c0_16] : memref<1x128xf32, #tpu.memory_space<vmem>>, vector<1x128xf32>
    %38 = vector.broadcast %37 : vector<1x128xf32> to vector<8x128xf32>
    %39 = arith.addf %36, %38 : vector<8x128xf32>
    %c0_17 = arith.constant 0 : index
    %c0_18 = arith.constant 0 : index
    %40 = vector.load %arg6[%c0_17, %c0_18] : memref<8x128xf32, #tpu.memory_space<vmem>>, vector<8x128xf32>
    tpu.vector_store %arg6[%c0_17, %c0_18], %39 {strides = array<i32>} : memref<8x128xf32, #tpu.memory_space<vmem>>, vector<8x128xf32>,
    return
  }
  func.func @transform_0(%arg0: i32) -> (i32, i32) {
    %c0_i32 = arith.constant 0 : i32
    %c0_i32_0 = arith.constant 0 : i32
    return %arg0, %c0_i32 : i32, i32
  }
  func.func @transform_1(%arg0: i32) -> (i32, i32) {
    %c0_i32 = arith.constant 0 : i32
    %c0_i32_0 = arith.constant 0 : i32
    %c0_i32_1 = arith.constant 0 : i32
    return %c0_i32, %c0_i32_0 : i32, i32
  }
  func.func @transform_2(%arg0: i32) -> (i32, i32) {
    %c0_i32 = arith.constant 0 : i32
    %c0_i32_0 = arith.constant 0 : i32
    %c0_i32_1 = arith.constant 0 : i32
    return %c0_i32, %c0_i32_0 : i32, i32
  }
  func.func @transform_3(%arg0: i32) -> (i32, i32) {
    %c0_i32 = arith.constant 0 : i32
    %c0_i32_0 = arith.constant 0 : i32
    %c0_i32_1 = arith.constant 0 : i32
    return %c0_i32, %c0_i32_0 : i32, i32
  }
  func.func @transform_4(%arg0: i32) -> (i32, i32) {
    %c0_i32 = arith.constant 0 : i32
    %c0_i32_0 = arith.constant 0 : i32
    %c0_i32_1 = arith.constant 0 : i32
    return %c0_i32, %c0_i32_0 : i32, i32
  }
  func.func @transform_5(%arg0: i32) -> (i32, i32) {
    %c0_i32 = arith.constant 0 : i32
    %c0_i32_0 = arith.constant 0 : i32
    return %arg0, %c0_i32 : i32, i32
  }
}

</mosaic_0001>

<llo_original>
// kernel: tpu_custom_call.1
$region0: #{tpu_custom_call.1}
  #allocation0 [shape = 'u32[]', space=smem, size = 0x4, offset = 0x4, fixed_abs, tag = 'smem constant byte address 0x4 - core index']
  #allocation1 [shape = 'u32[144,128]{1,0:T(1,128)}', space=vmem, size = 0x12000, scoped, tag = 'internal scratch']
  %s0 = inlined_call_operand.hbm [shape: f32[8,128], index: 0, kind: input, shape index: {}]
  %s1 = inlined_call_operand.hbm [shape: f32[128,128], index: 1, kind: input, shape index: {}]
  %s2 = inlined_call_operand.vmem [shape: f32[3,128], index: 2, kind: input, shape index: {}]
  %s3 = inlined_call_operand.hbm [shape: f32[128,128], index: 3, kind: input, shape index: {}]
  %s4 = inlined_call_operand.vmem [shape: f32[1,128], index: 4, kind: input, shape index: {}]
  %s5 = inlined_call_operand.hbm [shape: f32[8,128], index: 5, kind: output, shape index: {}]
  %s6 = sld [smem:[#allocation0]]
  $region42: #{tpu_custom_call.1} parent=0
    _
  %s8 = ssub.s32 1, %s6
  %s9 = scalar_select 0, %s8, %s6
  $region1: #{tpu_custom_call.1} parent=0
    #allocation2 [shape = 'u8[4096]{0}', space=vmem, size = 0x1000, scoped, tag = 'input window, operand 0, single buffered']
    #allocation3 [shape = 's32[1]{0}', space=sflag, size = 0x4, scoped, tag = 'scoped memory for tpu_custom_call.1']
    #allocation4 [shape = 's32[1]{0}', space=sflag, size = 0x4, scoped, tag = 'scoped memory for tpu_custom_call.1']
    #allocation5 [shape = 'u8[65536]{0}', space=vmem, size = 0x10000, scoped, tag = 'input window, operand 1, single buffered']
    #allocation6 [shape = 's32[1]{0}', space=sflag, size = 0x4, scoped, tag = 'scoped memory for tpu_custom_call.1']
    #allocation7 [shape = 'u8[65536]{0}', space=vmem, size = 0x10000, scoped, tag = 'input window, operand 3, single buffered']
    #allocation8 [shape = 'u8[4096]{0}', space=vmem, size = 0x1000, scoped, tag = 'output window, operand 0, single buffered']
    %10 = vsyncpa [#allocation3], 0
    %11 = vsyncpa [#allocation6], 0
    %12 = vsyncpa [#allocation4], 0
    // Predicated region
    $region2: #{tpu_custom_call.1} parent=1 // pred_check
      _
    $region3: #{tpu_custom_call.1} parent=1 // pred_check_branch
      %14 = sbr.rel (0) target = $region5
    $region4: #{tpu_custom_call.1} parent=1 // pred_region
      %s16 = ssub.s32 128, 128
      %17 = vsyncadd [#allocation3], %s16
      %s19 = sshll.u32 [#allocation2], 4
      %s20 = int_to_ptr.vmem [resolvable:$true] %s19
      %22 = dma.hbm_to_vmem [thread:$0]  %s0, 128, %s20, [#allocation3]
    $region5: #{tpu_custom_call.1} parent=1 // pred_fallthru
      _
    // Predicated region
    $region6: #{tpu_custom_call.1} parent=1 // pred_check
      _
    $region7: #{tpu_custom_call.1} parent=1 // pred_check_branch
      %24 = sbr.rel (0) target = $region9
    $region8: #{tpu_custom_call.1} parent=1 // pred_region
      %s26 = ssub.s32 2048, 2048
      %27 = vsyncadd [#allocation6], %s26
      %s28 = sshll.u32 [#allocation5], 4
      %s29 = int_to_ptr.vmem [resolvable:$true] %s28
      %34 = dma.hbm_to_vmem [thread:$0]  %s1, 2048, %s29, [#allocation6], 128, 128, 8
    $region9: #{tpu_custom_call.1} parent=1 // pred_fallthru
      _
    // Predicated region
    $region10: #{tpu_custom_call.1} parent=1 // pred_check
      _
    $region11: #{tpu_custom_call.1} parent=1 // pred_check_branch
      %36 = sbr.rel (0) target = $region13
    $region12: #{tpu_custom_call.1} parent=1 // pred_region
      _
    $region13: #{tpu_custom_call.1} parent=1 // pred_fallthru
      _
    // Predicated region
    $region14: #{tpu_custom_call.1} parent=1 // pred_check
      _
    $region15: #{tpu_custom_call.1} parent=1 // pred_check_branch
      %38 = sbr.rel (0) target = $region17
    $region16: #{tpu_custom_call.1} parent=1 // pred_region
      %s40 = ssub.s32 2048, 2048
      %41 = vsyncadd [#allocation6], %s40
      %s42 = sshll.u32 [#allocation7], 4
      %s43 = int_to_ptr.vmem [resolvable:$true] %s42
      %48 = dma.hbm_to_vmem [thread:$0]  %s3, 2048, %s43, [#allocation6], 128, 128, 8
    $region17: #{tpu_custom_call.1} parent=1 // pred_fallthru
      _
    // Predicated region
    $region18: #{tpu_custom_call.1} parent=1 // pred_check
      _
    $region19: #{tpu_custom_call.1} parent=1 // pred_check_branch
      %50 = sbr.rel (0) target = $region21
    $region20: #{tpu_custom_call.1} parent=1 // pred_region
      _
    $region21: #{tpu_custom_call.1} parent=1 // pred_fallthru
      _
    // Predicated region
    $region22: #{tpu_custom_call.1} parent=1 // pred_check
      _
    $region23: #{tpu_custom_call.1} parent=1 // pred_check_branch
      %52 = sbr.rel (0) target = $region25
    $region24: #{tpu_custom_call.1} parent=1 // pred_region
      %53 = dma.done [#allocation3], 128
    $region25: #{tpu_custom_call.1} parent=1 // pred_fallthru
      _
    // Predicated region
    $region26: #{tpu_custom_call.1} parent=1 // pred_check
      _
    $region27: #{tpu_custom_call.1} parent=1 // pred_check_branch
      %55 = sbr.rel (0) target = $region29
    $region28: #{tpu_custom_call.1} parent=1 // pred_region
      %56 = dma.done [#allocation6], 2048
    $region29: #{tpu_custom_call.1} parent=1 // pred_fallthru
      _
    // Predicated region
    $region30: #{tpu_custom_call.1} parent=1 // pred_check
      _
    $region31: #{tpu_custom_call.1} parent=1 // pred_check_branch
      %58 = sbr.rel (0) target = $region33
    $region32: #{tpu_custom_call.1} parent=1 // pred_region
      %59 = dma.done [#allocation6], 2048
    $region33: #{tpu_custom_call.1} parent=1 // pred_fallthru
      _
    %v60 = vld [vmem:[#allocation2] sm:$0xff]
    %v61 = vld [vmem:[#allocation5] sm:$0xff]
    %v62 = vld [vmem:[#allocation5 + $0x8] sm:$0xff]
    %v63 = vld [vmem:[#allocation5 + $0x10] sm:$0xff]
    %v64 = vld [vmem:[#allocation5 + $0x18] sm:$0xff]
    %v65 = vld [vmem:[#allocation5 + $0x20] sm:$0xff]
    %v66 = vld [vmem:[#allocation5 + $0x28] sm:$0xff]
    %v67 = vld [vmem:[#allocation5 + $0x30] sm:$0xff]
    %v68 = vld [vmem:[#allocation5 + $0x38] sm:$0xff]
    %v69 = vld [vmem:[#allocation5 + $0x40] sm:$0xff]
    %v70 = vld [vmem:[#allocation5 + $0x48] sm:$0xff]
    %v71 = vld [vmem:[#allocation5 + $0x50] sm:$0xff]
    %v72 = vld [vmem:[#allocation5 + $0x58] sm:$0xff]
    %v73 = vld [vmem:[#allocation5 + $0x60] sm:$0xff]
    %v74 = vld [vmem:[#allocation5 + $0x68] sm:$0xff]
    %v75 = vld [vmem:[#allocation5 + $0x70] sm:$0xff]
    %v76 = vld [vmem:[#allocation5 + $0x78] sm:$0xff]
    %v77 = vld [vmem:[%s2] sm:$0x7]
    %v78 = vlaneseq
    %v79 = vshrl.u32 %v78, 7
    %v80 = vsub.s32 0, %v79
    %v81 = vrot.slane %v77, %v80
    %82 = vmatprep.subr.mxu0 0.0
    %83 = vmatpush1.msra.mxu0 %v61
    %84 = vmatprep.subr.mxu0 0.0
    %85 = vmatpush1.msra.mxu0 %v62
    %86 = vmatprep.subr.mxu0 0.0
    %87 = vmatpush1.msra.mxu0 %v63
    %88 = vmatprep.subr.mxu0 0.0
    %89 = vmatpush1.msra.mxu0 %v64
    %90 = vmatprep.subr.mxu0 0.0
    %91 = vmatpush1.msra.mxu0 %v65
    %92 = vmatprep.subr.mxu0 0.0
    %93 = vmatpush1.msra.mxu0 %v66
    %94 = vmatprep.subr.mxu0 0.0
    %95 = vmatpush1.msra.mxu0 %v67
    %96 = vmatprep.subr.mxu0 0.0
    %97 = vmatpush1.msra.mxu0 %v68
    %98 = vmatprep.subr.mxu0 0.0
    %99 = vmatpush1.msra.mxu0 %v69
    %100 = vmatprep.subr.mxu0 0.0
    %101 = vmatpush1.msra.mxu0 %v70
    %102 = vmatprep.subr.mxu0 0.0
    %103 = vmatpush1.msra.mxu0 %v71
    %104 = vmatprep.subr.mxu0 0.0
    %105 = vmatpush1.msra.mxu0 %v72
    %106 = vmatprep.subr.mxu0 0.0
    %107 = vmatpush1.msra.mxu0 %v73
    %108 = vmatprep.subr.mxu0 0.0
    %109 = vmatpush1.msra.mxu0 %v74
    %110 = vmatprep.subr.mxu0 0.0
    %111 = vmatpush1.msra.mxu0 %v75
    %112 = vmatprep.subr.mxu0 0.0
    %113 = vmatpush1.msra.mxu0 %v76
    %114 = vmatprep.subr.mxu0 0.0
    %115 = vmatpush1.msra.mxu0 0.0
    %116 = vmatprep.subr.mxu0 0.0
    %117 = vmatpush1.msra.mxu0 0.0
    %118 = vmatprep.subr.mxu0 0.0
    %119 = vmatpush1.msra.mxu0 0.0
    %120 = vmatprep.subr.mxu0 0.0
    %121 = vmatpush1.msra.mxu0 0.0
    %122 = vmatprep.subr.mxu0 0.0
    %123 = vmatpush1.msra.mxu0 0.0
    %124 = vmatprep.subr.mxu0 0.0
    %125 = vmatpush1.msra.mxu0 0.0
    %126 = vmatprep.subr.mxu0 0.0
    %127 = vmatpush1.msra.mxu0 0.0
    %128 = vmatprep.subr.mxu0 0.0
    %129 = vmatpush1.msra.mxu0 0.0
    %130 = vmatprep.subr.mxu0 0.0
    %131 = vmatpush1.msra.mxu0 0.0
    %132 = vmatprep.subr.mxu0 0.0
    %133 = vmatpush1.msra.mxu0 0.0
    %134 = vmatprep.subr.mxu0 0.0
    %135 = vmatpush1.msra.mxu0 0.0
    %136 = vmatprep.subr.mxu0 0.0
    %137 = vmatpush1.msra.mxu0 0.0
    %138 = vmatprep.subr.mxu0 0.0
    %139 = vmatpush1.msra.mxu0 0.0
    %140 = vmatprep.subr.mxu0 0.0
    %141 = vmatpush1.msra.mxu0 0.0
    %142 = vmatprep.subr.mxu0 0.0
    %143 = vmatpush1.msra.mxu0 0.0
    %144 = vmatprep.subr.mxu0 0.0
    %145 = vmatpush1.msra.mxu0 0.0
    %146 = vmatprep.mubr.f32.mxu0 0.0
    %147 = vmatmul.mubr.f32.gmra.mrb[0].mxu0 %v60
    %v148 = vpop.f32.mrb[0].mxu0
    %v149 = vadd.f32 %v81, %v148
    %v150 = vpop.f32.mrb[0].mxu0
    %151 = vdwg.mxu0
    %152 = vadd.xlane.f32.xlu0 %v149
    %v153 = vpop.xlane.xlu0 %152
    %v154 = vmul.f32 %v153, 0.015625
    %v155 = vmul.f32 %v149, %v149
    %156 = vadd.xlane.f32.xlu0 %v155
    %v157 = vpop.xlane.xlu0 %156
    %v158 = vmul.f32 %v157, 0.015625
    %v159 = vmul.f32 %v154, %v154
    %v160 = vsub.f32 %v158, %v159
    %v161 = vmax.f32 %v160, 0.0
    %v162 = vsub.f32 %v149, %v154
    %v163 = vadd.f32 %v161, 1e-12
    %v164 = vrsqrt.pop %v163
    %v165 = vmul.f32 %v162, %v164
    %v166 = vlaneseq
    %v167 = vshrl.u32 %v166, 7
    %v168 = vsub.s32 1, %v167
    %v169 = vrot.slane %v77, %v168
    %v170 = vmul.f32 %v165, %v169
    %v171 = vlaneseq
    %v172 = vshrl.u32 %v171, 7
    %v173 = vsub.s32 2, %v172
    %v174 = vrot.slane %v77, %v173
    %v175 = vadd.f32 %v170, %v174
    %v176 = vmax.f32 %v175, 0.0
    %v177 = vld [vmem:[#allocation7] sm:$0xff]
    %v178 = vld [vmem:[#allocation7 + $0x8] sm:$0xff]
    %v179 = vld [vmem:[#allocation7 + $0x10] sm:$0xff]
    %v180 = vld [vmem:[#allocation7 + $0x18] sm:$0xff]
    %v181 = vld [vmem:[#allocation7 + $0x20] sm:$0xff]
    %v182 = vld [vmem:[#allocation7 + $0x28] sm:$0xff]
    %v183 = vld [vmem:[#allocation7 + $0x30] sm:$0xff]
    %v184 = vld [vmem:[#allocation7 + $0x38] sm:$0xff]
    %v185 = vld [vmem:[#allocation7 + $0x40] sm:$0xff]
    %v186 = vld [vmem:[#allocation7 + $0x48] sm:$0xff]
    %v187 = vld [vmem:[#allocation7 + $0x50] sm:$0xff]
    %v188 = vld [vmem:[#allocation7 + $0x58] sm:$0xff]
    %v189 = vld [vmem:[#allocation7 + $0x60] sm:$0xff]
    %v190 = vld [vmem:[#allocation7 + $0x68] sm:$0xff]
    %v191 = vld [vmem:[#allocation7 + $0x70] sm:$0xff]
    %v192 = vld [vmem:[#allocation7 + $0x78] sm:$0xff]
    %v193 = vld [vmem:[%s4] sm:$0x1]
    %v195 = vlaneseq
    %v196 = vshrl.u32 %v195, 7
    %v197 = vsub.s32 0, %v196
    %v198 = vrot.slane %v193, %v197
    %200 = vmatprep.subr.mxu0 0.0
    %201 = vmatpush1.msra.mxu0 %v177
    %202 = vmatprep.subr.mxu0 0.0
    %203 = vmatpush1.msra.mxu0 %v178
    %204 = vmatprep.subr.mxu0 0.0
    %205 = vmatpush1.msra.mxu0 %v179
    %206 = vmatprep.subr.mxu0 0.0
    %207 = vmatpush1.msra.mxu0 %v180
    %208 = vmatprep.subr.mxu0 0.0
    %209 = vmatpush1.msra.mxu0 %v181
    %210 = vmatprep.subr.mxu0 0.0
    %211 = vmatpush1.msra.mxu0 %v182
    %212 = vmatprep.subr.mxu0 0.0
    %213 = vmatpush1.msra.mxu0 %v183
    %214 = vmatprep.subr.mxu0 0.0
    %215 = vmatpush1.msra.mxu0 %v184
    %216 = vmatprep.subr.mxu0 0.0
    %217 = vmatpush1.msra.mxu0 %v185
    %218 = vmatprep.subr.mxu0 0.0
    %219 = vmatpush1.msra.mxu0 %v186
    %220 = vmatprep.subr.mxu0 0.0
    %221 = vmatpush1.msra.mxu0 %v187
    %222 = vmatprep.subr.mxu0 0.0
    %223 = vmatpush1.msra.mxu0 %v188
    %224 = vmatprep.subr.mxu0 0.0
    %225 = vmatpush1.msra.mxu0 %v189
    %226 = vmatprep.subr.mxu0 0.0
    %227 = vmatpush1.msra.mxu0 %v190
    %228 = vmatprep.subr.mxu0 0.0
    %229 = vmatpush1.msra.mxu0 %v191
    %230 = vmatprep.subr.mxu0 0.0
    %231 = vmatpush1.msra.mxu0 %v192
    %232 = vmatprep.subr.mxu0 0.0
    %233 = vmatpush1.msra.mxu0 0.0
    %234 = vmatprep.subr.mxu0 0.0
    %235 = vmatpush1.msra.mxu0 0.0
    %236 = vmatprep.subr.mxu0 0.0
    %237 = vmatpush1.msra.mxu0 0.0
    %238 = vmatprep.subr.mxu0 0.0
    %239 = vmatpush1.msra.mxu0 0.0
    %240 = vmatprep.subr.mxu0 0.0
    %241 = vmatpush1.msra.mxu0 0.0
    %242 = vmatprep.subr.mxu0 0.0
    %243 = vmatpush1.msra.mxu0 0.0
    %244 = vmatprep.subr.mxu0 0.0
    %245 = vmatpush1.msra.mxu0 0.0
    %246 = vmatprep.subr.mxu0 0.0
    %247 = vmatpush1.msra.mxu0 0.0
    %248 = vmatprep.subr.mxu0 0.0
    %249 = vmatpush1.msra.mxu0 0.0
    %250 = vmatprep.subr.mxu0 0.0
    %251 = vmatpush1.msra.mxu0 0.0
    %252 = vmatprep.subr.mxu0 0.0
    %253 = vmatpush1.msra.mxu0 0.0
    %254 = vmatprep.subr.mxu0 0.0
    %255 = vmatpush1.msra.mxu0 0.0
    %256 = vmatprep.subr.mxu0 0.0
    %257 = vmatpush1.msra.mxu0 0.0
    %258 = vmatprep.subr.mxu0 0.0
    %259 = vmatpush1.msra.mxu0 0.0
    %260 = vmatprep.subr.mxu0 0.0
    %261 = vmatpush1.msra.mxu0 0.0
    %262 = vmatprep.subr.mxu0 0.0
    %263 = vmatpush1.msra.mxu0 0.0
    %264 = vmatprep.mubr.f32.mxu0 0.0
    %265 = vmatmul.mubr.f32.gmra.mrb[0].mxu0 %v176
    %v266 = vpop.f32.mrb[0].mxu0
    %v267 = vadd.f32 %v198, %v266
    %v268 = vpop.f32.mrb[0].mxu0
    %269 = vdwg.mxu0
    %270 = vst [vmem:[#allocation8] sm:$0xff] %v267
    // Predicated region
    $region34: #{tpu_custom_call.1} parent=1 // pred_check
      _
    $region35: #{tpu_custom_call.1} parent=1 // pred_check_branch
      %272 = sbr.rel (0) target = $region37
    $region36: #{tpu_custom_call.1} parent=1 // pred_region
      %s274 = ssub.s32 128, 128
      %275 = vsyncadd [#allocation4], %s274
      %s277 = sshll.u32 [#allocation8], 4
      %s278 = int_to_ptr.vmem [resolvable:$true] %s277
      %280 = dma.vmem_to_hbm [thread:$0]  %s278, 128, %s5, [#allocation4]
    $region37: #{tpu_custom_call.1} parent=1 // pred_fallthru
      _
    // Predicated region
    $region38: #{tpu_custom_call.1} parent=1 // pred_check
      _
    $region39: #{tpu_custom_call.1} parent=1 // pred_check_branch
      %282 = sbr.rel (0) target = $region41
    $region40: #{tpu_custom_call.1} parent=1 // pred_region
      %283 = dma.done [#allocation4], 128
    $region41: #{tpu_custom_call.1} parent=1 // pred_fallthru
      _
    %284 = vsyncpa [#allocation3], 1
    %285 = vsyncpa [#allocation6], 1
    %286 = vsyncpa [#allocation4], 1

</llo_original>
